<compile_context>
chip_gen: v5e
topology: v5e:2x2
jax: 0.10.0
libtpu: 0.0.40
codegen_flags: <defaults>
</compile_context>

<pallas_src>
import jax
import jax.numpy as jnp
from jax.experimental import pallas as pl
from jax.experimental.pallas import tpu as pltpu

TEMP = 0.2
INV_TEMP = 1.0 / TEMP

_TILE_BYTES = 4 * 1024 * 1024          # ~4 MiB per block (per array)
_VMEM_LIMIT = 32 * 1024 * 1024         # explicit scoped-VMEM limit (all gens)


def _soft_clamp_kernel(x_ref, o_ref):
    x = x_ref[...]
    if x.dtype == jnp.float32:
        o_ref[...] = jnp.tanh(x * TEMP) * INV_TEMP
    else:
        # Upcast narrow floats for the EUP tanh (free in the HBM-bound regime).
        xf = x.astype(jnp.float32)
        o_ref[...] = (jnp.tanh(xf * TEMP) * INV_TEMP).astype(o_ref.dtype)


def _pallas_elementwise(x_nd, block_shape):
    """Run the kernel over x_nd (1-D or 2-D) with a 1-D grid on axis 0."""
    dsize = x_nd.dtype.itemsize
    rows = x_nd.shape[0]
    block_rows = block_shape[0]
    grid_steps = pl.cdiv(rows, block_rows)

    # Advisory cost: count the blocks actually touched (incl. padded tail).
    block_elems = 1
    for d in block_shape:
        block_elems *= d
    n_touch = grid_steps * block_elems

    if len(block_shape) == 2:
        index_map = lambda i: (i, 0)
    else:
        index_map = lambda i: (i,)

    return pl.pallas_call(
        _soft_clamp_kernel,
        out_shape=jax.ShapeDtypeStruct(x_nd.shape, x_nd.dtype),
        grid_spec=pltpu.PrefetchScalarGridSpec(
            num_scalar_prefetch=0,
            grid=(grid_steps,),
            in_specs=[pl.BlockSpec(block_shape, index_map)],
            out_specs=pl.BlockSpec(block_shape, index_map),
        ),
        compiler_params=pltpu.CompilerParams(
            dimension_semantics=("parallel",),
            vmem_limit_bytes=_VMEM_LIMIT,
        ),
        cost_estimate=pl.CostEstimate(
            flops=2 * n_touch,
            transcendentals=n_touch,
            bytes_accessed=2 * n_touch * dsize,
        ),
    )(x_nd)


def _pick_block_rows(rows, lane, dsize):
    """~_TILE_BYTES rows, 8-multiple, capped so the grid has >= ~4 steps."""
    target = max(8, (_TILE_BYTES // (lane * dsize)) // 8 * 8)
    quarter = max(8, (pl.cdiv(rows, 4) // 8) * 8)   # megacore: >= 4 steps
    br = min(target, quarter)
    if br >= rows:
        br = rows                                    # full extent: always legal
    return br


def _pick_block_elems(n, dsize):
    unit = 8 * 128                                   # keep blocks (8,128)-clean
    target = max(unit, (_TILE_BYTES // dsize) // unit * unit)
    quarter = max(unit, (pl.cdiv(n, 4) // unit) * unit)
    be = min(target, quarter)
    if be >= n:
        be = n                                       # single full-extent block
    return be


def _soft_clamp(x):
    orig_shape = x.shape
    n = x.size
    dsize = x.dtype.itemsize

    # Fast path: widest lane dividing n exactly -> copy-free 2-D reshape.
    lane = None
    for cand in (1024, 512, 256, 128):
        if n % cand == 0:
            lane = cand
            break

    if lane is not None:
        rows = n // lane
        block_rows = _pick_block_rows(rows, lane, dsize)
        out2d = _pallas_elementwise(x.reshape(rows, lane), (block_rows, lane))
        return out2d.reshape(orig_shape)

    # Ragged path: flat 1-D grid, partial last block masked in-kernel
    # (no jnp.pad, no output slice -> single read + write HBM pass).
    block_elems = _pick_block_elems(n, dsize)
    out_flat = _pallas_elementwise(x.reshape(-1), (block_elems,))
    return out_flat.reshape(orig_shape)


# jit so reshapes + pallas_call fuse into one program (no eager dispatches).
soft_clamp = jax.jit(_soft_clamp)


if __name__ == "__main__":
    key = jax.random.PRNGKey(0)

    # NCHW input, as the PyTorch module would receive.
    x = jax.random.normal(key, (2, 4, 16, 16), dtype=jnp.float32) * 10.0
    y = soft_clamp(x)
    jax.block_until_ready(y)
    y_ref = jnp.tanh(x * TEMP) / TEMP
    assert y.shape == x.shape and y.dtype == x.dtype
    assert jnp.allclose(y, y_ref, atol=1e-5, rtol=1e-5)

    # Ragged element count (3*5*7*11 = 1155): exercises the masked 1-D path.
    x2 = jax.random.normal(jax.random.PRNGKey(1), (3, 5, 7, 11),
                           dtype=jnp.float32) * 5.0
    y2 = soft_clamp(x2)
    jax.block_until_ready(y2)
    y2_ref = jnp.tanh(x2 * TEMP) / TEMP
    assert y2.shape == x2.shape and y2.dtype == x2.dtype
    assert jnp.allclose(y2, y2_ref, atol=1e-5, rtol=1e-5)

    # Mid-size input: exercises a multi-step grid (megacore-shardable).
    x3 = jax.random.normal(jax.random.PRNGKey(2), (4, 8, 128, 128),
                           dtype=jnp.float32) * 3.0
    y3 = soft_clamp(x3)
    jax.block_until_ready(y3)
    y3_ref = jnp.tanh(x3 * TEMP) / TEMP
    assert y3.shape == x3.shape and y3.dtype == x3.dtype
    assert jnp.allclose(y3, y3_ref, atol=1e-5, rtol=1e-5)

    print("KERNEL_OK")
</pallas_src>

<mosaic_0001>
module attributes {stable_mosaic.version = 11 : i64} {
  func.func @_soft_clamp_kernel(%arg0: i32, %arg1: memref<2x1024xf32, #tpu.memory_space<vmem>>, %arg2: memref<2x1024xf32, #tpu.memory_space<vmem>>) attributes {dimension_semantics = [#tpu.dimension_semantics<parallel>], iteration_bounds = array<i64: 1>, scalar_prefetch = 0 : i64, scratch_operands = 0 : i64, tpu.core_type = #tpu.core_type<tc>, window_params = [{transform_indices = @transform_0, window_bounds = array<i64: 2, 1024>}, {transform_indices = @transform_1, window_bounds = array<i64: 2, 1024>}]} {
    %c0 = arith.constant 0 : index
    %c0_0 = arith.constant 0 : index
    %0 = vector.load %arg1[%c0, %c0_0] : memref<2x1024xf32, #tpu.memory_space<vmem>>, vector<2x1024xf32>
    %cst = arith.constant 2.000000e-01 : f32
    %1 = vector.broadcast %cst : f32 to vector<2x1024xf32>
    %2 = arith.mulf %0, %1 : vector<2x1024xf32>
    %3 = math.tanh %2 : vector<2x1024xf32>
    %cst_1 = arith.constant 5.000000e+00 : f32
    %4 = vector.broadcast %cst_1 : f32 to vector<2x1024xf32>
    %5 = arith.mulf %3, %4 : vector<2x1024xf32>
    %c0_2 = arith.constant 0 : index
    %c0_3 = arith.constant 0 : index
    %6 = vector.load %arg2[%c0_2, %c0_3] : memref<2x1024xf32, #tpu.memory_space<vmem>>, vector<2x1024xf32>
    tpu.vector_store %arg2[%c0_2, %c0_3], %5 {strides = array<i32>} : memref<2x1024xf32, #tpu.memory_space<vmem>>, vector<2x1024xf32>,
    return
  }
  func.func @transform_0(%arg0: i32) -> (i32, i32) {
    %c0_i32 = arith.constant 0 : i32
    %c0_i32_0 = arith.constant 0 : i32
    return %arg0, %c0_i32 : i32, i32
  }
  func.func @transform_1(%arg0: i32) -> (i32, i32) {
    %c0_i32 = arith.constant 0 : i32
    %c0_i32_0 = arith.constant 0 : i32
    return %arg0, %c0_i32 : i32, i32
  }
}

</mosaic_0001>

<llo_original>
// kernel: _soft_clamp.1
$region0: #{_soft_clamp.1}
  #allocation0 [shape = 'u32[]', space=smem, size = 0x4, offset = 0x4, fixed_abs, tag = 'smem constant byte address 0x4 - core index']
  #allocation1 [shape = 'u32[72,128]{1,0:T(1,128)}', space=vmem, size = 0x9000, scoped, tag = 'internal scratch']
  %s0 = inlined_call_operand.vmem [shape: f32[2,1024], index: 0, kind: input, shape index: {}]
  %s1 = inlined_call_operand.vmem [shape: f32[2,1024], index: 1, kind: output, shape index: {}]
  %s2 = sld [smem:[#allocation0]]
  $region14: #{_soft_clamp.1} parent=0
    _
  %s4 = ssub.s32 1, %s2
  %s5 = scalar_select 0, %s4, %s2
  // Predicated region
  $region2: #{_soft_clamp.1} parent=0 // pred_check
    _
  $region3: #{_soft_clamp.1} parent=0 // pred_check_branch
    %7 = sbr.rel (0) target = $region5
  $region4: #{_soft_clamp.1} parent=0 // pred_region
    _
  $region5: #{_soft_clamp.1} parent=0 // pred_fallthru
    _
  %v8 = vld [vmem:[%s0] sm:$0xff]
  %v9 = vld [vmem:[%s0 + $0x8] sm:$0xff]
  %v10 = vmul.f32 %v8, 0.2
  %v11 = vmul.f32 %v9, 0.2
  %v12 = vtanh.pop %v10
  %v13 = vtanh.pop %v11
  %v14 = vmul.f32 %v12, 5.0
  %v15 = vmul.f32 %v13, 5.0
  %16 = vst [vmem:[%s1] sm:$0xff] %v14
  %17 = vst [vmem:[%s1 + $0x8] sm:$0xff] %v15
  // Predicated region
  $region6: #{_soft_clamp.1} parent=0 // pred_check
    _
  $region7: #{_soft_clamp.1} parent=0 // pred_check_branch
    %19 = sbr.rel (0) target = $region9
  $region8: #{_soft_clamp.1} parent=0 // pred_region
    _
  $region9: #{_soft_clamp.1} parent=0 // pred_fallthru
    _
  // Predicated region
  $region10: #{_soft_clamp.1} parent=0 // pred_check
    _
  $region11: #{_soft_clamp.1} parent=0 // pred_check_branch
    %21 = sbr.rel (0) target = $region13
  $region12: #{_soft_clamp.1} parent=0 // pred_region
    _
  $region13: #{_soft_clamp.1} parent=0 // pred_fallthru
    _

</llo_original>
